<compile_context>
chip_gen: v7x
topology: tpu7x:2x2x1
jax: 0.10.0
libtpu: 0.0.40
codegen_flags: <defaults>
</compile_context>

<pallas_src>
import jax
import jax.numpy as jnp
from jax.experimental import pallas as pl
from jax.experimental.pallas import tpu as pltpu


def _cdiv(a, b):
    return -(-a // b)


def sv_interaction_kernel(s_ref, v_ref, wsv_ref, bsv_ref, wvs_ref,
                          out_s_ref, out_v_ref):
    # s_ref:   (TN, S)      scalar tile
    # v_ref:   (3, TN, V)   vector tile, component-major (xyz slowest)
    # wsv_ref: (S, V)       s_to_v weight, pre-transposed:  s @ wsv = Linear(s)
    # bsv_ref: (1, V)       s_to_v bias
    # wvs_ref: (V, S)       v_to_s weight, pre-transposed:  v_d @ wvs
    tn, s_dim = s_ref.shape
    v_dim = v_ref.shape[2]

    s = s_ref[...]                      # native dtype, fed straight to the MXU
    v = v_ref[...]                      # (3, TN, V), native dtype

    # coef_v = s_to_v(s)  -> (TN, V), f32 accumulation on the MXU.
    coef = jnp.dot(s, wsv_ref[...], preferred_element_type=jnp.float32)
    coef = coef + bsv_ref[...].astype(jnp.float32)

    # bias_s = sum_d (v_d @ W_vs)^2  -> (TN, S).
    # One MXU push for all three xyz components: collapse (3, TN, V) to
    # (3*TN, V) (sublane-contiguous: TN is a whole number of packed sublane
    # tiles by construction), one matmul, then a 3-way squared-sum.
    u = jnp.dot(v.reshape(3 * tn, v_dim), wvs_ref[...],
                preferred_element_type=jnp.float32)          # (3*TN, S)
    u = u.reshape(3, tn, s_dim)
    bias = jnp.sum(u * u, axis=0)                             # (TN, S), f32

    out_s_ref[...] = (s.astype(jnp.float32) + bias).astype(out_s_ref.dtype)

    # out.v = coef_v * v : gate in the stream dtype (one downcast of coef,
    # TNxV) instead of upcasting the big (3,TN,V) tensor to f32.  For f32
    # streams this is identical to before; for bf16 it halves VALU work and
    # vreg/VMEM footprint (bf16 VPU on v6e/v7x; on v5e it is still correct).
    coef_g = coef.astype(v.dtype)
    out_v_ref[...] = (coef_g[None, :, :] * v).astype(out_v_ref.dtype)


def _vmem_capacity_bytes():
    """Per-core VMEM capacity; conservative (v7x) fallback if unavailable."""
    try:
        return int(pltpu.get_tpu_info().vmem_capacity_bytes)
    except Exception:
        return 64 << 20


def _sublane_rows(itemsize):
    """Rows per packed sublane tile: 8 (f32), 16 (bf16), 32 (int8/fp8)."""
    return 8 * (4 // itemsize)


def _per_row_bytes(S, V, itemsize):
    """VMEM bytes per streamed row: double-buffered in+out tiles plus the f32
    intermediates (u: 3S, bias: S, s upcast: S, coef: V, slack V) and the
    stream-dtype gated product (3V)."""
    return (2 * 2 * (S + 3 * V) * itemsize
            + 4 * (5 * S + 2 * V)
            + itemsize * 3 * V)


def _choose_tile_n(N, S, V, itemsize, budget_bytes):
    """Pick tile_n as a multiple of the dtype sublane packing that fits the
    VMEM budget, preferring >= 4 (even) grid steps (v7x dual-TC pipelining),
    then >= 2 steps, then a single step; ties broken by minimal padding."""
    step = _sublane_rows(itemsize)
    n_pad = _cdiv(N, step) * step
    per_row = _per_row_bytes(S, V, itemsize)
    max_rows = max(step, (budget_bytes // per_row) // step * step)
    cands = list(range(step, min(n_pad, max_rows) + 1, step))
    if not cands:
        return step

    def nsteps(t):
        return _cdiv(N, t)

    for pred in ((lambda t: nsteps(t) >= 4 and nsteps(t) % 2 == 0),
                 (lambda t: nsteps(t) >= 2),
                 (lambda t: True)):
        ok = [t for t in cands if pred(t)]
        if ok:
            # fewest steps first (biggest tiles), then least total padding
            return min(ok, key=lambda t: (nsteps(t), nsteps(t) * t))
    return step


def sv_interaction(s, v_cm, wsv_t, b_sv, wvs_t, *, tile_n=None):
    """Component-major API (no boundary transposes on the hot path).

    s:    (N, S)
    v_cm: (3, N, V)   -- xyz component-major vector features
    Returns (out_s: (N, S), out_v_cm: (3, N, V)).
    """
    N, S = s.shape
    assert v_cm.shape[0] == 3 and v_cm.shape[1] == N
    V = v_cm.shape[2]
    assert wsv_t.shape == (S, V) and wvs_t.shape == (V, S)
    assert b_sv.shape[-1] == V

    itemsize = jnp.dtype(s.dtype).itemsize
    w_itemsize = jnp.dtype(wsv_t.dtype).itemsize
    vmem_cap = _vmem_capacity_bytes()

    if tile_n is None:
        tile_n = _choose_tile_n(N, S, V, itemsize,
                                budget_bytes=int(0.40 * vmem_cap))
    step = _sublane_rows(itemsize)
    assert tile_n % step == 0, "tile_n must match the dtype sublane packing"

    # Pad N once to a tile multiple (cheaper + lower-risk than relying on
    # ragged masked blocks); outputs are sliced back below.
    pad = (-N) % tile_n
    if pad:
        s_in = jnp.pad(s, ((0, pad), (0, 0)))
        v_in = jnp.pad(v_cm, ((0, 0), (0, pad), (0, 0)))
    else:
        s_in, v_in = s, v_cm
    Np = N + pad
    grid_n = Np // tile_n

    b2 = b_sv.reshape(1, V)

    # Explicit VMEM limit: streamed tiles + intermediates + resident weights
    # + headroom, capped at ~70% of physical per-core VMEM.
    tile_bytes = tile_n * _per_row_bytes(S, V, itemsize)
    weight_bytes = 2 * (S * V + V * S + V) * w_itemsize
    vmem_limit = int(min(max(1.3 * (tile_bytes + weight_bytes), 8 << 20),
                         0.70 * vmem_cap))

    # Advisory cost estimate (memory-bound op).
    flops = int(2 * N * S * V + 6 * N * V * S + 6 * N * S + 3 * N * V + N * S)
    bytes_accessed = int(itemsize * 2 * (N * S + 3 * N * V)
                         + w_itemsize * (S * V + V + V * S))
    cost = pl.CostEstimate(flops=flops, transcendentals=0,
                           bytes_accessed=bytes_accessed)

    out_s, out_v_cm = pl.pallas_call(
        sv_interaction_kernel,
        out_shape=(jax.ShapeDtypeStruct((Np, S), s.dtype),
                   jax.ShapeDtypeStruct((3, Np, V), v_cm.dtype)),
        grid=(grid_n,),
        in_specs=[
            pl.BlockSpec((tile_n, S), lambda i: (i, 0)),        # s tile
            pl.BlockSpec((3, tile_n, V), lambda i: (0, i, 0)),  # v tile (cm)
            pl.BlockSpec((S, V), lambda i: (0, 0)),             # W_sv^T (resident)
            pl.BlockSpec((1, V), lambda i: (0, 0)),             # b_sv
            pl.BlockSpec((V, S), lambda i: (0, 0)),             # W_vs^T (resident)
        ],
        out_specs=(pl.BlockSpec((tile_n, S), lambda i: (i, 0)),
                   pl.BlockSpec((3, tile_n, V), lambda i: (0, i, 0))),
        compiler_params=pltpu.CompilerParams(
            dimension_semantics=("parallel",),
            vmem_limit_bytes=vmem_limit),
        cost_estimate=cost,
    )(s_in, v_in, wsv_t, b2, wvs_t)

    if pad:
        out_s = out_s[:N]
        out_v_cm = out_v_cm[:, :N]
    return out_s, out_v_cm


def sv_interaction_torch_layout(s, v, wsv_t, b_sv, wvs_t, *, tile_n=None):
    """Compatibility wrapper for the PyTorch (N, V, 3) vector layout.
    NOTE: the two transposes each cost an extra HBM pass; prefer keeping
    vectors component-major (3, N, V) in the surrounding model and calling
    sv_interaction() directly."""
    out_s, out_v_cm = sv_interaction(s, jnp.transpose(v, (2, 0, 1)),
                                     wsv_t, b_sv, wvs_t, tile_n=tile_n)
    return out_s, jnp.transpose(out_v_cm, (1, 2, 0))


def reference_cm(s, v_cm, wsv_t, b_sv, wvs_t):
    coef = s @ wsv_t + b_sv                           # (N, V)
    u = jnp.einsum('dnv,vs->dns', v_cm, wvs_t)        # (3, N, S)
    bias_s = jnp.sum(u * u, axis=0)                   # (N, S)
    return s + bias_s, coef[None, :, :] * v_cm


if __name__ == "__main__":
    key = jax.random.PRNGKey(0)
    k1, k2, k3, k4, k5 = jax.random.split(key, 5)

    # --- Case 1: f32 streams, full-extent (lane) feature dims, 4 grid steps.
    N, S, V = 128, 64, 64
    s = jax.random.normal(k1, (N, S), dtype=jnp.float32)
    v_cm = jax.random.normal(k2, (3, N, V), dtype=jnp.float32)
    # nn.Linear(S, V): weight (V, S), bias (V,) -> pass weight transposed (S, V)
    wsv_t = jax.random.normal(k3, (S, V), dtype=jnp.float32) * 0.1
    b_sv = jax.random.normal(k4, (V,), dtype=jnp.float32) * 0.1
    # VectorLinear(V, S): weight (S, V), no bias -> pass transposed (V, S)
    wvs_t = jax.random.normal(k5, (V, S), dtype=jnp.float32) * 0.1

    out_s, out_v_cm = sv_interaction(s, v_cm, wsv_t, b_sv, wvs_t)
    jax.block_until_ready((out_s, out_v_cm))
    ref_s, ref_v_cm = reference_cm(s, v_cm, wsv_t, b_sv, wvs_t)
    assert jnp.allclose(out_s, ref_s, atol=1e-4, rtol=1e-4)
    assert jnp.allclose(out_v_cm, ref_v_cm, atol=1e-4, rtol=1e-4)

    # --- Case 2: bf16 streams (review's top rec for this HBM-bound op) with a
    # non-dividing N (wrapper pads once, slices back).
    N2 = 120
    s16 = s[:N2].astype(jnp.bfloat16)
    v16 = v_cm[:, :N2].astype(jnp.bfloat16)
    w1_16 = wsv_t.astype(jnp.bfloat16)
    b_16 = b_sv.astype(jnp.bfloat16)
    w2_16 = wvs_t.astype(jnp.bfloat16)
    out_s16, out_v16 = sv_interaction(s16, v16, w1_16, b_16, w2_16)
    jax.block_until_ready((out_s16, out_v16))
    ref_s16, ref_v16 = reference_cm(
        s16.astype(jnp.float32), v16.astype(jnp.float32),
        w1_16.astype(jnp.float32), b_16.astype(jnp.float32),
        w2_16.astype(jnp.float32))
    assert jnp.allclose(out_s16.astype(jnp.float32), ref_s16, atol=6e-2, rtol=6e-2)
    assert jnp.allclose(out_v16.astype(jnp.float32), ref_v16, atol=6e-2, rtol=6e-2)

    # --- Case 3: PyTorch (N, V, 3) layout compatibility wrapper.
    out_s3, out_v3 = sv_interaction_torch_layout(
        s, jnp.transpose(v_cm, (1, 2, 0)), wsv_t, b_sv, wvs_t)
    jax.block_until_ready((out_s3, out_v3))
    assert jnp.allclose(out_s3, ref_s, atol=1e-4, rtol=1e-4)
    assert jnp.allclose(out_v3, jnp.transpose(ref_v_cm, (1, 2, 0)),
                        atol=1e-4, rtol=1e-4)

    print("KERNEL_OK")
</pallas_src>

<mosaic_0001>
module attributes {stable_mosaic.version = 11 : i64} {
  func.func @sv_interaction_kernel(%arg0: i32, %arg1: memref<32x64xf32, #tpu.memory_space<vmem>>, %arg2: memref<3x32x64xf32, #tpu.memory_space<vmem>>, %arg3: memref<64x64xf32, #tpu.memory_space<vmem>>, %arg4: memref<1x64xf32, #tpu.memory_space<vmem>>, %arg5: memref<64x64xf32, #tpu.memory_space<vmem>>, %arg6: memref<32x64xf32, #tpu.memory_space<vmem>>, %arg7: memref<3x32x64xf32, #tpu.memory_space<vmem>>) attributes {dimension_semantics = [#tpu.dimension_semantics<parallel>], iteration_bounds = array<i64: 4>, scalar_prefetch = 0 : i64, scratch_operands = 0 : i64, tpu.core_type = #tpu.core_type<tc>, window_params = [{transform_indices = @transform_0, window_bounds = array<i64: 32, 64>}, {transform_indices = @transform_1, window_bounds = array<i64: 3, 32, 64>}, {pipeline_mode = #tpu.pipeline_mode<synchronous>, transform_indices = @transform_2, window_bounds = array<i64: 64, 64>}, {pipeline_mode = #tpu.pipeline_mode<synchronous>, transform_indices = @transform_3, window_bounds = array<i64: 1, 64>}, {pipeline_mode = #tpu.pipeline_mode<synchronous>, transform_indices = @transform_4, window_bounds = array<i64: 64, 64>}, {transform_indices = @transform_5, window_bounds = array<i64: 32, 64>}, {transform_indices = @transform_6, window_bounds = array<i64: 3, 32, 64>}]} {
    %c0 = arith.constant 0 : index
    %c0_0 = arith.constant 0 : index
    %0 = vector.load %arg1[%c0, %c0_0] : memref<32x64xf32, #tpu.memory_space<vmem>>, vector<32x64xf32>
    %c0_1 = arith.constant 0 : index
    %c0_2 = arith.constant 0 : index
    %c0_3 = arith.constant 0 : index
    %1 = vector.load %arg2[%c0_1, %c0_2, %c0_3] : memref<3x32x64xf32, #tpu.memory_space<vmem>>, vector<3x32x64xf32>
    %c0_4 = arith.constant 0 : index
    %c0_5 = arith.constant 0 : index
    %2 = vector.load %arg3[%c0_4, %c0_5] : memref<64x64xf32, #tpu.memory_space<vmem>>, vector<64x64xf32>
    %cst = arith.constant dense<0.000000e+00> : vector<32x64xf32>
    %3 = tpu.matmul %0, %2, %cst {dimension_numbers = #tpu.dot_dimension_numbers<[1], [0], [0], [1], [0, 0, 1, 1], [], []>} : vector<32x64xf32>, vector<64x64xf32>, vector<32x64xf32> -> vector<32x64xf32>
    %c0_6 = arith.constant 0 : index
    %c0_7 = arith.constant 0 : index
    %4 = vector.load %arg4[%c0_6, %c0_7] : memref<1x64xf32, #tpu.memory_space<vmem>>, vector<1x64xf32>
    %5 = vector.broadcast %4 : vector<1x64xf32> to vector<32x64xf32>
    %6 = arith.addf %3, %5 : vector<32x64xf32>
    %7 = vector.shape_cast %1 : vector<3x32x64xf32> to vector<96x64xf32>
    %c0_8 = arith.constant 0 : index
    %c0_9 = arith.constant 0 : index
    %8 = vector.load %arg5[%c0_8, %c0_9] : memref<64x64xf32, #tpu.memory_space<vmem>>, vector<64x64xf32>
    %cst_10 = arith.constant dense<0.000000e+00> : vector<96x64xf32>
    %9 = tpu.matmul %7, %8, %cst_10 {dimension_numbers = #tpu.dot_dimension_numbers<[1], [0], [0], [1], [0, 0, 1, 1], [], []>} : vector<96x64xf32>, vector<64x64xf32>, vector<96x64xf32> -> vector<96x64xf32>
    %10 = vector.shape_cast %9 : vector<96x64xf32> to vector<3x32x64xf32>
    %11 = arith.mulf %10, %10 : vector<3x32x64xf32>
    %cst_11 = arith.constant dense<0.000000e+00> : vector<32x64xf32>
    %12 = vector.multi_reduction <add>, %11, %cst_11 [0] : vector<3x32x64xf32> to vector<32x64xf32>
    %13 = arith.addf %0, %12 : vector<32x64xf32>
    %c0_12 = arith.constant 0 : index
    %c0_13 = arith.constant 0 : index
    %14 = vector.load %arg6[%c0_12, %c0_13] : memref<32x64xf32, #tpu.memory_space<vmem>>, vector<32x64xf32>
    tpu.vector_store %arg6[%c0_12, %c0_13], %13 {strides = array<i32>} : memref<32x64xf32, #tpu.memory_space<vmem>>, vector<32x64xf32>,
    %15 = vector.shape_cast %6 : vector<32x64xf32> to vector<1x32x64xf32>
    %16 = vector.broadcast %15 : vector<1x32x64xf32> to vector<3x32x64xf32>
    %17 = arith.mulf %16, %1 : vector<3x32x64xf32>
    %c0_14 = arith.constant 0 : index
    %c0_15 = arith.constant 0 : index
    %c0_16 = arith.constant 0 : index
    %18 = vector.load %arg7[%c0_14, %c0_15, %c0_16] : memref<3x32x64xf32, #tpu.memory_space<vmem>>, vector<3x32x64xf32>
    tpu.vector_store %arg7[%c0_14, %c0_15, %c0_16], %17 {strides = array<i32>} : memref<3x32x64xf32, #tpu.memory_space<vmem>>, vector<3x32x64xf32>,
    return
  }
  func.func @transform_0(%arg0: i32) -> (i32, i32) {
    %c0_i32 = arith.constant 0 : i32
    %c0_i32_0 = arith.constant 0 : i32
    return %arg0, %c0_i32 : i32, i32
  }
  func.func @transform_1(%arg0: i32) -> (i32, i32, i32) {
    %c0_i32 = arith.constant 0 : i32
    %c0_i32_0 = arith.constant 0 : i32
    %c0_i32_1 = arith.constant 0 : i32
    return %c0_i32, %arg0, %c0_i32_0 : i32, i32, i32
  }
  func.func @transform_2(%arg0: i32) -> (i32, i32) {
    %c0_i32 = arith.constant 0 : i32
    %c0_i32_0 = arith.constant 0 : i32
    %c0_i32_1 = arith.constant 0 : i32
    return %c0_i32, %c0_i32_0 : i32, i32
  }
  func.func @transform_3(%arg0: i32) -> (i32, i32) {
    %c0_i32 = arith.constant 0 : i32
    %c0_i32_0 = arith.constant 0 : i32
    %c0_i32_1 = arith.constant 0 : i32
    return %c0_i32, %c0_i32_0 : i32, i32
  }
  func.func @transform_4(%arg0: i32) -> (i32, i32) {
    %c0_i32 = arith.constant 0 : i32
    %c0_i32_0 = arith.constant 0 : i32
    %c0_i32_1 = arith.constant 0 : i32
    return %c0_i32, %c0_i32_0 : i32, i32
  }
  func.func @transform_5(%arg0: i32) -> (i32, i32) {
    %c0_i32 = arith.constant 0 : i32
    %c0_i32_0 = arith.constant 0 : i32
    return %arg0, %c0_i32 : i32, i32
  }
  func.func @transform_6(%arg0: i32) -> (i32, i32, i32) {
    %c0_i32 = arith.constant 0 : i32
    %c0_i32_0 = arith.constant 0 : i32
    %c0_i32_1 = arith.constant 0 : i32
    return %c0_i32, %arg0, %c0_i32_0 : i32, i32, i32
  }
}

</mosaic_0001>

<llo_original>
// kernel: tpu_custom_call.1
$region0: #{tpu_custom_call.1}
  #allocation0 [shape = 'u32[]', space=smem, size = 0x4, offset = 0x4, fixed_abs, tag = 'smem constant byte address 0x4 - core index']
  #allocation1 [shape = 'u32[144,128]{1,0:T(1,128)}', space=vmem, size = 0x12000, scoped, tag = 'internal scratch']
  %s0 = inlined_call_operand.vmem [shape: f32[128,64], index: 0, kind: input, shape index: {}]
  %s1 = inlined_call_operand.vmem [shape: f32[3,128,64], index: 1, kind: input, shape index: {}]
  %s2 = inlined_call_operand.vmem [shape: f32[64,64], index: 2, kind: input, shape index: {}]
  %s3 = inlined_call_operand.vmem [shape: f32[1,64], index: 3, kind: input, shape index: {}]
  %s4 = inlined_call_operand.vmem [shape: f32[64,64], index: 4, kind: input, shape index: {}]
  %s5 = inlined_call_operand.vmem [shape: f32[128,64], index: 5, kind: output, shape index: {0}]
  %s6 = inlined_call_operand.vmem [shape: f32[3,128,64], index: 6, kind: output, shape index: {1}]
  %7 = xla_tuple %s5, %s6
  %s8 = sld [smem:[#allocation0]]
  $region133: #{tpu_custom_call.1} parent=0
    _
  %s10 = ssub.s32 1, %s8
  %s11 = scalar_select 0, %s10, %s8
  $region1: #{tpu_custom_call.1} parent=0
    #allocation2 [shape = 'u8[98304]{0}', space=vmem, size = 0x18000, scoped, tag = 'input window, operand 1']
    #allocation3 [shape = 'u8[98304]{0}', space=vmem, size = 0x18000, scoped, tag = 'output window, operand 1']
    loop: start=0, step=1, limit=6
    $region2: #{tpu_custom_call.1} parent=1 // loop_pre_header
      _
    $region3: #{tpu_custom_call.1} parent=1 // loop_header
      %s13 = sphi 0, %s17
      %p14 = scmp.ge.s32.totalorder %s13, 6
      %s23 = sphi 0, %s25
      %s26 = sphi 0, %s23
      %s27 = sphi 0, %s26
      %s43 = sphi 0, %s27
      %s49 = sphi 0, %s51
      %s52 = sphi 0, %s49
      %s53 = sphi 0, %s52
      %s69 = sphi 0, %s53
      %s73 = sphi 0, %s73
      %s75 = sphi 0, %s73
      %s76 = sphi 0, %s75
      %s90 = sphi 0, %s76
      %s94 = sphi 0, %s94
      %s96 = sphi 0, %s94
      %s97 = sphi 0, %s96
      %s111 = sphi 0, %s97
      %s115 = sphi 0, %s115
      %s117 = sphi 0, %s115
      %s118 = sphi 0, %s117
      %s132 = sphi 0, %s118
      %s138 = sphi 0, %s140
      %s141 = sphi 0, %s138
      %s142 = sphi 0, %s141
      %s158 = sphi 0, %s142
      %s164 = sphi 0, %s166
      %s167 = sphi 0, %s164
      %s168 = sphi 0, %s167
      %s184 = sphi 0, %s168
    $region4: #{tpu_custom_call.1} parent=1 // loop_header_branch
      %16 = sbr.rel (%p14) target = $region8
    $region5: #{tpu_custom_call.1} parent=1 // loop_body
      %s18 = ssub.s32 %s13, 1
      %s19 = ssub.s32 %s13, 2
      %s20 = sadd.s32 %s13, 1
      %s21 = ssub.s32 %s13, %s20
      %p22 = scmp.eq.s32.totalorder %s21, 0
      %s24 = sadd.s32 %s23, 1
      %s25 = scalar_select %p22, %s23, %s24
      %p28 = pneg %p22
      %p29 = scmp.eq.s32.totalorder %s13, 3
      %p30 = por %p28, %p29
      %p31 = scmp.ne.s32.totalorder %s23, %s26
      %p32 = scmp.eq.s32.totalorder %s13, 0
      %p33 = por %p31, %p32
      %p34 = scmp.ne.s32.totalorder %s23, %s26
      %p35 = scmp.eq.s32.totalorder %s18, 3
      %p36 = por %p34, %p35
      %p37 = scmp.ne.s32.totalorder %s26, %s27
      %p38 = scmp.eq.s32.totalorder %s18, 0
      %p39 = por %p37, %p38
      %p40 = scmp.ne.s32.totalorder %s26, %s27
      %p41 = scmp.eq.s32.totalorder %s19, 3
      %p42 = por %p40, %p41
      %p44 = scmp.ne.s32.totalorder %s27, %s43
      %p45 = scmp.eq.s32.totalorder %s19, 0
      %p46 = por %p44, %p45
      %s47 = ssub.s32 %s13, %s20
      %p48 = scmp.eq.s32.totalorder %s47, 0
      %s50 = sadd.s32 %s49, 1
      %s51 = scalar_select %p48, %s49, %s50
      %p54 = pneg %p48
      %p55 = scmp.eq.s32.totalorder %s13, 3
      %p56 = por %p54, %p55
      %p57 = scmp.ne.s32.totalorder %s49, %s52
      %p58 = scmp.eq.s32.totalorder %s13, 0
      %p59 = por %p57, %p58
      %p60 = scmp.ne.s32.totalorder %s49, %s52
      %p61 = scmp.eq.s32.totalorder %s18, 3
      %p62 = por %p60, %p61
      %p63 = scmp.ne.s32.totalorder %s52, %s53
      %p64 = scmp.eq.s32.totalorder %s18, 0
      %p65 = por %p63, %p64
      %p66 = scmp.ne.s32.totalorder %s52, %s53
      %p67 = scmp.eq.s32.totalorder %s19, 3
      %p68 = por %p66, %p67
      %p70 = scmp.ne.s32.totalorder %s53, %s69
      %p71 = scmp.eq.s32.totalorder %s19, 0
      %p72 = por %p70, %p71
      %s74 = sadd.s32 %s73, 1
      %p77 = scmp.eq.s32.totalorder %s13, 3
      %p78 = scmp.ne.s32.totalorder %s73, %s75
      %p79 = scmp.eq.s32.totalorder %s13, 0
      %p80 = por %p78, %p79
      %p81 = scmp.ne.s32.totalorder %s73, %s75
      %p82 = scmp.eq.s32.totalorder %s18, 3
      %p83 = por %p81, %p82
      %p84 = scmp.ne.s32.totalorder %s75, %s76
      %p85 = scmp.eq.s32.totalorder %s18, 0
      %p86 = por %p84, %p85
      %p87 = scmp.ne.s32.totalorder %s75, %s76
      %p88 = scmp.eq.s32.totalorder %s19, 3
      %p89 = por %p87, %p88
      %p91 = scmp.ne.s32.totalorder %s76, %s90
      %p92 = scmp.eq.s32.totalorder %s19, 0
      %p93 = por %p91, %p92
      %s95 = sadd.s32 %s94, 1
      %p98 = scmp.eq.s32.totalorder %s13, 3
      %p99 = scmp.ne.s32.totalorder %s94, %s96
      %p100 = scmp.eq.s32.totalorder %s13, 0
      %p101 = por %p99, %p100
      %p102 = scmp.ne.s32.totalorder %s94, %s96
      %p103 = scmp.eq.s32.totalorder %s18, 3
      %p104 = por %p102, %p103
      %p105 = scmp.ne.s32.totalorder %s96, %s97
      %p106 = scmp.eq.s32.totalorder %s18, 0
      %p107 = por %p105, %p106
      %p108 = scmp.ne.s32.totalorder %s96, %s97
      %p109 = scmp.eq.s32.totalorder %s19, 3
      %p110 = por %p108, %p109
      %p112 = scmp.ne.s32.totalorder %s97, %s111
      %p113 = scmp.eq.s32.totalorder %s19, 0
      %p114 = por %p112, %p113
      %s116 = sadd.s32 %s115, 1
      %p119 = scmp.eq.s32.totalorder %s13, 3
      %p120 = scmp.ne.s32.totalorder %s115, %s117
      %p121 = scmp.eq.s32.totalorder %s13, 0
      %p122 = por %p120, %p121
      %p123 = scmp.ne.s32.totalorder %s115, %s117
      %p124 = scmp.eq.s32.totalorder %s18, 3
      %p125 = por %p123, %p124
      %p126 = scmp.ne.s32.totalorder %s117, %s118
      %p127 = scmp.eq.s32.totalorder %s18, 0
      %p128 = por %p126, %p127
      %p129 = scmp.ne.s32.totalorder %s117, %s118
      %p130 = scmp.eq.s32.totalorder %s19, 3
      %p131 = por %p129, %p130
      %p133 = scmp.ne.s32.totalorder %s118, %s132
      %p134 = scmp.eq.s32.totalorder %s19, 0
      %p135 = por %p133, %p134
      %s136 = ssub.s32 %s13, %s20
      %p137 = scmp.eq.s32.totalorder %s136, 0
      %s139 = sadd.s32 %s138, 1
      %s140 = scalar_select %p137, %s138, %s139
      %p143 = pneg %p137
      %p144 = scmp.eq.s32.totalorder %s13, 3
      %p145 = por %p143, %p144
      %p146 = scmp.ne.s32.totalorder %s138, %s141
      %p147 = scmp.eq.s32.totalorder %s13, 0
      %p148 = por %p146, %p147
      %p149 = scmp.ne.s32.totalorder %s138, %s141
      %p150 = scmp.eq.s32.totalorder %s18, 3
      %p151 = por %p149, %p150
      %p152 = scmp.ne.s32.totalorder %s141, %s142
      %p153 = scmp.eq.s32.totalorder %s18, 0
      %p154 = por %p152, %p153
      %p155 = scmp.ne.s32.totalorder %s141, %s142
      %p156 = scmp.eq.s32.totalorder %s19, 3
      %p157 = por %p155, %p156
      %p159 = scmp.ne.s32.totalorder %s142, %s158
      %p160 = scmp.eq.s32.totalorder %s19, 0
      %p161 = por %p159, %p160
      %s162 = ssub.s32 %s13, %s20
      %p163 = scmp.eq.s32.totalorder %s162, 0
      %s165 = sadd.s32 %s164, 1
      %s166 = scalar_select %p163, %s164, %s165
      %p169 = pneg %p163
      %p170 = scmp.eq.s32.totalorder %s13, 3
      %p171 = por %p169, %p170
      %p172 = scmp.ne.s32.totalorder %s164, %s167
      %p173 = scmp.eq.s32.totalorder %s13, 0
      %p174 = por %p172, %p173
      %p175 = scmp.ne.s32.totalorder %s164, %s167
      %p176 = scmp.eq.s32.totalorder %s18, 3
      %p177 = por %p175, %p176
      %p178 = scmp.ne.s32.totalorder %s167, %s168
      %p179 = scmp.eq.s32.totalorder %s18, 0
      %p180 = por %p178, %p179
      %p181 = scmp.ne.s32.totalorder %s167, %s168
      %p182 = scmp.eq.s32.totalorder %s19, 3
      %p183 = por %p181, %p182
      %p185 = scmp.ne.s32.totalorder %s168, %s184
      %p186 = scmp.eq.s32.totalorder %s19, 0
      %p187 = por %p185, %p186
      %p188 = scmp.le.s32.totalorder 1, %s13
      %p189 = scmp.lt.s32.totalorder %s13, 5
      %p190 = pnand %p188, %p189
      %p191 = pneg %p190
      // Predicated region
      $region9: #{tpu_custom_call.1} parent=5 // pred_check
        _
      $region10: #{tpu_custom_call.1} parent=5 // pred_check_branch
        %193 = sbr.rel (%p190) target = $region12
      $region11: #{tpu_custom_call.1} parent=5 // pred_region
        %s194 = ssub.s32 %s13, 1
        // Predicated region
        $region13: #{tpu_custom_call.1} parent=11 // pred_check
          %p195 = pneg %p86
        $region14: #{tpu_custom_call.1} parent=11 // pred_check_branch
          %197 = sbr.rel (%p195) target = $region16
        $region15: #{tpu_custom_call.1} parent=11 // pred_region
          _
        $region16: #{tpu_custom_call.1} parent=11 // pred_fallthru
          _
        // Predicated region
        $region17: #{tpu_custom_call.1} parent=11 // pred_check
          %p198 = pneg %p107
        $region18: #{tpu_custom_call.1} parent=11 // pred_check_branch
          %200 = sbr.rel (%p198) target = $region20
        $region19: #{tpu_custom_call.1} parent=11 // pred_region
          _
        $region20: #{tpu_custom_call.1} parent=11 // pred_fallthru
          _
        // Predicated region
        $region21: #{tpu_custom_call.1} parent=11 // pred_check
          %p201 = pneg %p128
        $region22: #{tpu_custom_call.1} parent=11 // pred_check_branch
          %203 = sbr.rel (%p201) target = $region24
        $region23: #{tpu_custom_call.1} parent=11 // pred_region
          _
        $region24: #{tpu_custom_call.1} parent=11 // pred_fallthru
          _
      $region12: #{tpu_custom_call.1} parent=5 // pred_fallthru
        _
      %p204 = scmp.lt.s32.totalorder %s13, 4
      // Predicated region
      $region25: #{tpu_custom_call.1} parent=5 // pred_check
        %p205 = pneg %p204
      $region26: #{tpu_custom_call.1} parent=5 // pred_check_branch
        %207 = sbr.rel (%p205) target = $region28
      $region27: #{tpu_custom_call.1} parent=5 // pred_region
        // Predicated region
        $region29: #{tpu_custom_call.1} parent=27 // pred_check
          %p208 = pneg %p33
        $region30: #{tpu_custom_call.1} parent=27 // pred_check_branch
          %210 = sbr.rel (%p208) target = $region32
        $region31: #{tpu_custom_call.1} parent=27 // pred_region
          %s211 = smul.u32 4, %s13
          %p212 = scmp.lt.s32.totalorder %s211, 15
          %s213 = scalar_select %p212, %s211, 15
          %s214 = smul.addr %s213, 8
          %s215 = scalar_lea.vmem %s0, %s214
          %s216 = smul.u32 4, %s13
        $region32: #{tpu_custom_call.1} parent=27 // pred_fallthru
          _
        // Predicated region
        $region33: #{tpu_custom_call.1} parent=27 // pred_check
          %p217 = pneg %p59
        $region34: #{tpu_custom_call.1} parent=27 // pred_check_branch
          %219 = sbr.rel (%p217) target = $region36
        $region35: #{tpu_custom_call.1} parent=27 // pred_region
          %s220 = sand.u32 %s49, 1
          %s221 = sand.u32 %s49, 1
          %s222 = smul.addr %s221, 96
          %s223 = scalar_lea.vmem [#allocation2], %s222
          %s224 = smul.u32 4, %s13
          %s225 = smul.addr %s224, 8
          %s226 = scalar_lea.vmem %s1, %s225
          // Predicated region
          $region37: #{tpu_custom_call.1} parent=35 // pred_check
            _
          $region38: #{tpu_custom_call.1} parent=35 // pred_check_branch
            %228 = sbr.rel (0) target = $region40
          $region39: #{tpu_custom_call.1} parent=35 // pred_region
            // Predicated region
            $region41: #{tpu_custom_call.1} parent=39 // pred_check
              _
            $region42: #{tpu_custom_call.1} parent=39 // pred_check_branch
              %230 = sbr.rel (0) target = $region44
            $region43: #{tpu_custom_call.1} parent=39 // pred_region
              // Predicated region
              $region56: #{tpu_custom_call.1} parent=43 // pred_check
                _
              $region57: #{tpu_custom_call.1} parent=43 // pred_check_branch
                %267 = sbr.rel (0) target = $region59
              $region58: #{tpu_custom_call.1} parent=43 // pred_region
                loop: start=0, step=1, limit=1
                $region60: #{tpu_custom_call.1} parent=58 // loop_pre_header
                  _
                $region61: #{tpu_custom_call.1} parent=58 // loop_header
                  %s269 = sphi 0, %s273
                  %p270 = scmp.ge.s32.totalorder %s269, 1
                  %s274 = sphi %s226, %s226
                  %s275 = sphi %s223, %s223
                $region62: #{tpu_custom_call.1} parent=58 // loop_header_branch
                  %272 = sbr.rel (%p270) target = $region66
                $region63: #{tpu_custom_call.1} parent=58 // loop_body
                  %v276 = vld [vmem:[%s274] sm:$0xff]
                  %277 = vst [vmem:[%s275] sm:$0xff] %v276
                  %v278 = vld [vmem:[%s274 + $0x8] sm:$0xff]
                  %279 = vst [vmem:[%s275 + $0x8] sm:$0xff] %v278
                  %v280 = vld [vmem:[%s274 + $0x10] sm:$0xff]
                  %281 = vst [vmem:[%s275 + $0x10] sm:$0xff] %v280
                  %v282 = vld [vmem:[%s274 + $0x18] sm:$0xff]
                  %283 = vst [vmem:[%s275 + $0x18] sm:$0xff] %v282
                  %v284 = vld [vmem:[%s274 + $0x80] sm:$0xff]
                  %285 = vst [vmem:[%s275 + $0x20] sm:$0xff] %v284
                  %v286 = vld [vmem:[%s274 + $0x88] sm:$0xff]
                  %287 = vst [vmem:[%s275 + $0x28] sm:$0xff] %v286
                  %v288 = vld [vmem:[%s274 + $0x90] sm:$0xff]
                  %289 = vst [vmem:[%s275 + $0x30] sm:$0xff] %v288
                  %v290 = vld [vmem:[%s274 + $0x98] sm:$0xff]
                  %291 = vst [vmem:[%s275 + $0x38] sm:$0xff] %v290
                  %v292 = vld [vmem:[%s274 + $0x100] sm:$0xff]
                  %293 = vst [vmem:[%s275 + $0x40] sm:$0xff] %v292
                  %v294 = vld [vmem:[%s274 + $0x108] sm:$0xff]
                  %295 = vst [vmem:[%s275 + $0x48] sm:$0xff] %v294
                  %v296 = vld [vmem:[%s274 + $0x110] sm:$0xff]
                  %297 = vst [vmem:[%s275 + $0x50] sm:$0xff] %v296
                  %v298 = vld [vmem:[%s274 + $0x118] sm:$0xff]
                  %299 = vst [vmem:[%s275 + $0x58] sm:$0xff] %v298
                $region64: #{tpu_custom_call.1} parent=58 // loop_footer
                  %s273 = sadd.s32 1, %s269
                $region65: #{tpu_custom_call.1} parent=58 // loop_footer_branch
                  %268 = sbr.rel target = $region61
                $region66: #{tpu_custom_call.1} parent=58 // loop_exit
                  _
              $region59: #{tpu_custom_call.1} parent=43 // pred_fallthru
                _
              // Predicated region
              $region67: #{tpu_custom_call.1} parent=43 // pred_check
                _
              $region68: #{tpu_custom_call.1} parent=43 // pred_check_branch
                %301 = sbr.rel target = $region70
              $region69: #{tpu_custom_call.1} parent=43 // pred_region
                _
              $region70: #{tpu_custom_call.1} parent=43 // pred_fallthru
                _
            $region44: #{tpu_custom_call.1} parent=39 // pred_fallthru
              _
            // Predicated region
            $region45: #{tpu_custom_call.1} parent=39 // pred_check
              _
            $region46: #{tpu_custom_call.1} parent=39 // pred_check_branch
              %232 = sbr.rel target = $region48
            $region47: #{tpu_custom_call.1} parent=39 // pred_region
              loop: start=0, step=1, limit=1
              $region49: #{tpu_custom_call.1} parent=47 // loop_pre_header
                _
              $region50: #{tpu_custom_call.1} parent=47 // loop_header
                %s235 = sphi 0, %s239
                %p236 = scmp.ge.s32.totalorder %s235, 1
                %s240 = sphi %s226, %s226
                %s241 = sphi %s223, %s223
              $region51: #{tpu_custom_call.1} parent=47 // loop_header_branch
                %238 = sbr.rel (%p236) target = $region55
              $region52: #{tpu_custom_call.1} parent=47 // loop_body
                %v242 = vld [vmem:[%s240] sm:$0xff]
                %243 = vst [vmem:[%s241] sm:$0xff] %v242
                %v244 = vld [vmem:[%s240 + $0x8] sm:$0xff]
                %245 = vst [vmem:[%s241 + $0x8] sm:$0xff] %v244
                %v246 = vld [vmem:[%s240 + $0x10] sm:$0xff]
                %247 = vst [vmem:[%s241 + $0x10] sm:$0xff] %v246
                %v248 = vld [vmem:[%s240 + $0x18] sm:$0xff]
                %249 = vst [vmem:[%s241 + $0x18] sm:$0xff] %v248
                %v250 = vld [vmem:[%s240 + $0x80] sm:$0xff]
                %251 = vst [vmem:[%s241 + $0x20] sm:$0xff] %v250
                %v252 = vld [vmem:[%s240 + $0x88] sm:$0xff]
                %253 = vst [vmem:[%s241 + $0x28] sm:$0xff] %v252
                %v254 = vld [vmem:[%s240 + $0x90] sm:$0xff]
                %255 = vst [vmem:[%s241 + $0x30] sm:$0xff] %v254
                %v256 = vld [vmem:[%s240 + $0x98] sm:$0xff]
                %257 = vst [vmem:[%s241 + $0x38] sm:$0xff] %v256
                %v258 = vld [vmem:[%s240 + $0x100] sm:$0xff]
                %259 = vst [vmem:[%s241 + $0x40] sm:$0xff] %v258
                %v260 = vld [vmem:[%s240 + $0x108] sm:$0xff]
                %261 = vst [vmem:[%s241 + $0x48] sm:$0xff] %v260
                %v262 = vld [vmem:[%s240 + $0x110] sm:$0xff]
                %263 = vst [vmem:[%s241 + $0x50] sm:$0xff] %v262
                %v264 = vld [vmem:[%s240 + $0x118] sm:$0xff]
                %265 = vst [vmem:[%s241 + $0x58] sm:$0xff] %v264
              $region53: #{tpu_custom_call.1} parent=47 // loop_footer
                %s239 = sadd.s32 1, %s235
              $region54: #{tpu_custom_call.1} parent=47 // loop_footer_branch
                %234 = sbr.rel target = $region50
              $region55: #{tpu_custom_call.1} parent=47 // loop_exit
                _
            $region48: #{tpu_custom_call.1} parent=39 // pred_fallthru
              _
          $region40: #{tpu_custom_call.1} parent=35 // pred_fallthru
            _
          %302 = vnop
        $region36: #{tpu_custom_call.1} parent=27 // pred_fallthru
          _
      $region28: #{tpu_custom_call.1} parent=5 // pred_fallthru
        _
      %p303 = scmp.le.s32.totalorder 1, %s13
      %p304 = scmp.lt.s32.totalorder %s13, 5
      %p305 = pnand %p303, %p304
      %p306 = pneg %p305
      // Predicated region
      $region71: #{tpu_custom_call.1} parent=5 // pred_check
        _
      $region72: #{tpu_custom_call.1} parent=5 // pred_check_branch
        %308 = sbr.rel (%p305) target = $region74
      $region73: #{tpu_custom_call.1} parent=5 // pred_region
        %s309 = ssub.s32 %s13, 1
        %s310 = sand.u32 %s52, 1
        %s311 = sand.u32 %s52, 1
        %s312 = smul.addr %s311, 96
        %s313 = scalar_lea.vmem [#allocation2], %s312
        // Predicated region
        $region75: #{tpu_custom_call.1} parent=73 // pred_check
          %p314 = pneg %p65
        $region76: #{tpu_custom_call.1} parent=73 // pred_check_branch
          %316 = sbr.rel (%p314) target = $region78
        $region77: #{tpu_custom_call.1} parent=73 // pred_region
          _
        $region78: #{tpu_custom_call.1} parent=73 // pred_fallthru
          _
        %s317 = smul.u32 4, %s18
        %p318 = scmp.lt.s32.totalorder %s317, 15
        %s319 = scalar_select %p318, %s317, 15
        %s320 = smul.addr %s319, 8
        %s321 = scalar_lea.vmem %s0, %s320
        %p322 = pneg %p39
        %p323 = pneg %p36
        %s324 = sand.u32 %s52, 1
        %s325 = sand.u32 %s52, 1
        %s326 = smul.addr %s325, 96
        %s327 = scalar_lea.vmem [#allocation2], %s326
        %p328 = pneg %p65
        %p329 = pneg %p62
        %p330 = pneg %p86
        %p331 = pneg %p83
        %p332 = pneg %p107
        %p333 = pneg %p104
        %p334 = pneg %p128
        %p335 = pneg %p125
        %p336 = pneg %p154
        %p337 = pneg %p151
        %s338 = smul.u32 4, %s18
        %p339 = scmp.lt.s32.totalorder %s338, 15
        %s340 = scalar_select %p339, %s338, 15
        %s341 = smul.addr %s340, 8
        %s342 = scalar_lea.vmem %s5, %s341
        %p343 = pneg %p180
        %p344 = pneg %p177
        %s345 = sand.u32 %s167, 1
        %s346 = sand.u32 %s167, 1
        %s347 = smul.addr %s346, 96
        %s348 = scalar_lea.vmem [#allocation3], %s347
        %s349 = smul.u32 4, %s18
        %p350 = scmp.lt.s32.totalorder %s349, 15
        %s351 = scalar_select %p350, %s349, 15
        %s352 = smul.addr %s351, 8
        %s353 = scalar_lea.vmem %s0, %s352
        %s354 = smul.u32 4, %s18
        %s355 = smul.u32 4, %s18
        %s356 = smul.u32 4, %s18
        %p357 = scmp.lt.s32.totalorder %s356, 15
        %s358 = scalar_select %p357, %s356, 15
        %s359 = smul.addr %s358, 8
        %s360 = scalar_lea.vmem %s5, %s359
        %s361 = smul.u32 4, %s18
        %s362 = smul.u32 4, %s18
        %v363 = vld [vmem:[%s353] sm:$0xff]
        %v364 = vld [vmem:[%s353 + $0x8] sm:$0xff]
        %v365 = vld [vmem:[%s353 + $0x10] sm:$0xff]
        %v366 = vld [vmem:[%s353 + $0x18] sm:$0xff]
        %v367 = vld [vmem:[%s313] sm:$0xff]
        %v368 = vld [vmem:[%s313 + $0x8] sm:$0xff]
        %v369 = vld [vmem:[%s313 + $0x10] sm:$0xff]
        %v370 = vld [vmem:[%s313 + $0x18] sm:$0xff]
        %v371 = vld [vmem:[%s313 + $0x20] sm:$0xff]
        %v372 = vld [vmem:[%s313 + $0x28] sm:$0xff]
        %v373 = vld [vmem:[%s313 + $0x30] sm:$0xff]
        %v374 = vld [vmem:[%s313 + $0x38] sm:$0xff]
        %v375 = vld [vmem:[%s313 + $0x40] sm:$0xff]
        %v376 = vld [vmem:[%s313 + $0x48] sm:$0xff]
        %v377 = vld [vmem:[%s313 + $0x50] sm:$0xff]
        %v378 = vld [vmem:[%s313 + $0x58] sm:$0xff]
        %v379 = vld [vmem:[%s2] sm:$0xff]
        %v380 = vld [vmem:[%s2 + $0x8] sm:$0xff]
        %v381 = vld [vmem:[%s2 + $0x10] sm:$0xff]
        %v382 = vld [vmem:[%s2 + $0x18] sm:$0xff]
        %v383 = vld [vmem:[%s2 + $0x20] sm:$0xff]
        %v384 = vld [vmem:[%s2 + $0x28] sm:$0xff]
        %v385 = vld [vmem:[%s2 + $0x30] sm:$0xff]
        %v386 = vld [vmem:[%s2 + $0x38] sm:$0xff]
        %v387 = vld [vmem:[%s3] sm:$0x1]
        %v389 = vlaneseq
        %v390 = vshrl.u32 %v389, 7
        %v391 = vsub.s32 0, %v390
        %v392 = vrot.slane %v387, %v391
        %vm394 = vcmask 523264
        %v396 = vsel %vm394, %v363, 0
        %v399 = vsel %vm394, %v364, 0
        %v402 = vsel %vm394, %v365, 0
        %v405 = vsel %vm394, %v366, 0
        %407 = vmatprep.subr.mxu0 0.0
        %408 = vmatpush1.msra.mxu0 %v379
        %409 = vmatprep.subr.mxu0 0.0
        %410 = vmatpush1.msra.mxu0 %v380
        %411 = vmatprep.subr.mxu0 0.0
        %412 = vmatpush1.msra.mxu0 %v381
        %413 = vmatprep.subr.mxu0 0.0
        %414 = vmatpush1.msra.mxu0 %v382
        %415 = vmatprep.subr.mxu0 0.0
        %416 = vmatpush1.msra.mxu0 %v383
        %417 = vmatprep.subr.mxu0 0.0
        %418 = vmatpush1.msra.mxu0 %v384
        %419 = vmatprep.subr.mxu0 0.0
        %420 = vmatpush1.msra.mxu0 %v385
        %421 = vmatprep.subr.mxu0 0.0
        %422 = vmatpush1.msra.mxu0 %v386
        %423 = vmatprep.subr.mxu0 0.0
        %424 = vmatpush1.msra.mxu0 0.0
        %425 = vmatprep.subr.mxu0 0.0
        %426 = vmatpush1.msra.mxu0 0.0
        %427 = vmatprep.subr.mxu0 0.0
        %428 = vmatpush1.msra.mxu0 0.0
        %429 = vmatprep.subr.mxu0 0.0
        %430 = vmatpush1.msra.mxu0 0.0
        %431 = vmatprep.subr.mxu0 0.0
        %432 = vmatpush1.msra.mxu0 0.0
        %433 = vmatprep.subr.mxu0 0.0
        %434 = vmatpush1.msra.mxu0 0.0
        %435 = vmatprep.subr.mxu0 0.0
        %436 = vmatpush1.msra.mxu0 0.0
        %437 = vmatprep.subr.mxu0 0.0
        %438 = vmatpush1.msra.mxu0 0.0
        %439 = vmatprep.subr.mxu0 0.0
        %440 = vmatpush1.msra.mxu0 0.0
        %441 = vmatprep.subr.mxu0 0.0
        %442 = vmatpush1.msra.mxu0 0.0
        %443 = vmatprep.subr.mxu0 0.0
        %444 = vmatpush1.msra.mxu0 0.0
        %445 = vmatprep.subr.mxu0 0.0
        %446 = vmatpush1.msra.mxu0 0.0
        %447 = vmatprep.subr.mxu0 0.0
        %448 = vmatpush1.msra.mxu0 0.0
        %449 = vmatprep.subr.mxu0 0.0
        %450 = vmatpush1.msra.mxu0 0.0
        %451 = vmatprep.subr.mxu0 0.0
        %452 = vmatpush1.msra.mxu0 0.0
        %453 = vmatprep.subr.mxu0 0.0
        %454 = vmatpush1.msra.mxu0 0.0
        %455 = vmatprep.subr.mxu0 0.0
        %456 = vmatpush1.msra.mxu0 0.0
        %457 = vmatprep.subr.mxu0 0.0
        %458 = vmatpush1.msra.mxu0 0.0
        %459 = vmatprep.subr.mxu0 0.0
        %460 = vmatpush1.msra.mxu0 0.0
        %461 = vmatprep.subr.mxu0 0.0
        %462 = vmatpush1.msra.mxu0 0.0
        %463 = vmatprep.subr.mxu0 0.0
        %464 = vmatpush1.msra.mxu0 0.0
        %465 = vmatprep.subr.mxu0 0.0
        %466 = vmatpush1.msra.mxu0 0.0
        %467 = vmatprep.subr.mxu0 0.0
        %468 = vmatpush1.msra.mxu0 0.0
        %469 = vmatprep.subr.mxu0 0.0
        %470 = vmatpush1.msra.mxu0 0.0
        %471 = vmatprep.mubr.f32.mxu0 0.0
        %472 = vmatmul.mubr.f32.gmra.mrb[0].mxu0 %v396
        %v473 = vpop.f32.mrb[0].mxu0
        %v474 = vadd.f32 %v392, %v473
        %v475 = vpop.f32.mrb[0].mxu0
        %476 = vmatprep.mubr.f32.mxu0 0.0
        %477 = vmatmul.mubr.f32.gmra.mrb[0].mxu0 %v399
        %v478 = vpop.f32.mrb[0].mxu0
        %v479 = vadd.f32 %v392, %v478
        %v480 = vpop.f32.mrb[0].mxu0
        %481 = vmatprep.mubr.f32.mxu0 0.0
        %482 = vmatmul.mubr.f32.gmra.mrb[0].mxu0 %v402
        %v483 = vpop.f32.mrb[0].mxu0
        %v484 = vadd.f32 %v392, %v483
        %v485 = vpop.f32.mrb[0].mxu0
        %486 = vmatprep.mubr.f32.mxu0 0.0
        %487 = vmatmul.mubr.f32.gmra.mrb[0].mxu0 %v405
        %v488 = vpop.f32.mrb[0].mxu0
        %v489 = vadd.f32 %v392, %v488
        %v490 = vpop.f32.mrb[0].mxu0
        %491 = vdwg.mxu0
        %v492 = vld [vmem:[%s4] sm:$0xff]
        %v493 = vld [vmem:[%s4 + $0x8] sm:$0xff]
        %v494 = vld [vmem:[%s4 + $0x10] sm:$0xff]
        %v495 = vld [vmem:[%s4 + $0x18] sm:$0xff]
        %v496 = vld [vmem:[%s4 + $0x20] sm:$0xff]
        %v497 = vld [vmem:[%s4 + $0x28] sm:$0xff]
        %v498 = vld [vmem:[%s4 + $0x30] sm:$0xff]
        %v499 = vld [vmem:[%s4 + $0x38] sm:$0xff]
        %v501 = vsel %vm394, %v367, 0
        %v504 = vsel %vm394, %v368, 0
        %v507 = vsel %vm394, %v369, 0
        %v510 = vsel %vm394, %v370, 0
        %v513 = vsel %vm394, %v371, 0
        %v516 = vsel %vm394, %v372, 0
        %v519 = vsel %vm394, %v373, 0
        %v522 = vsel %vm394, %v374, 0
        %v525 = vsel %vm394, %v375, 0
        %v528 = vsel %vm394, %v376, 0
        %v531 = vsel %vm394, %v377, 0
        %v534 = vsel %vm394, %v378, 0
        %536 = vmatprep.subr.mxu0 0.0
        %537 = vmatpush1.msra.mxu0 %v492
        %538 = vmatprep.subr.mxu0 0.0
        %539 = vmatpush1.msra.mxu0 %v493
        %540 = vmatprep.subr.mxu0 0.0
        %541 = vmatpush1.msra.mxu0 %v494
        %542 = vmatprep.subr.mxu0 0.0
        %543 = vmatpush1.msra.mxu0 %v495
        %544 = vmatprep.subr.mxu0 0.0
        %545 = vmatpush1.msra.mxu0 %v496
        %546 = vmatprep.subr.mxu0 0.0
        %547 = vmatpush1.msra.mxu0 %v497
        %548 = vmatprep.subr.mxu0 0.0
        %549 = vmatpush1.msra.mxu0 %v498
        %550 = vmatprep.subr.mxu0 0.0
        %551 = vmatpush1.msra.mxu0 %v499
        %552 = vmatprep.subr.mxu0 0.0
        %553 = vmatpush1.msra.mxu0 0.0
        %554 = vmatprep.subr.mxu0 0.0
        %555 = vmatpush1.msra.mxu0 0.0
        %556 = vmatprep.subr.mxu0 0.0
        %557 = vmatpush1.msra.mxu0 0.0
        %558 = vmatprep.subr.mxu0 0.0
        %559 = vmatpush1.msra.mxu0 0.0
        %560 = vmatprep.subr.mxu0 0.0
        %561 = vmatpush1.msra.mxu0 0.0
        %562 = vmatprep.subr.mxu0 0.0
        %563 = vmatpush1.msra.mxu0 0.0
        %564 = vmatprep.subr.mxu0 0.0
        %565 = vmatpush1.msra.mxu0 0.0
        %566 = vmatprep.subr.mxu0 0.0
        %567 = vmatpush1.msra.mxu0 0.0
        %568 = vmatprep.subr.mxu0 0.0
        %569 = vmatpush1.msra.mxu0 0.0
        %570 = vmatprep.subr.mxu0 0.0
        %571 = vmatpush1.msra.mxu0 0.0
        %572 = vmatprep.subr.mxu0 0.0
        %573 = vmatpush1.msra.mxu0 0.0
        %574 = vmatprep.subr.mxu0 0.0
        %575 = vmatpush1.msra.mxu0 0.0
        %576 = vmatprep.subr.mxu0 0.0
        %577 = vmatpush1.msra.mxu0 0.0
        %578 = vmatprep.subr.mxu0 0.0
        %579 = vmatpush1.msra.mxu0 0.0
        %580 = vmatprep.subr.mxu0 0.0
        %581 = vmatpush1.msra.mxu0 0.0
        %582 = vmatprep.subr.mxu0 0.0
        %583 = vmatpush1.msra.mxu0 0.0
        %584 = vmatprep.subr.mxu0 0.0
        %585 = vmatpush1.msra.mxu0 0.0
        %586 = vmatprep.subr.mxu0 0.0
        %587 = vmatpush1.msra.mxu0 0.0
        %588 = vmatprep.subr.mxu0 0.0
        %589 = vmatpush1.msra.mxu0 0.0
        %590 = vmatprep.subr.mxu0 0.0
        %591 = vmatpush1.msra.mxu0 0.0
        %592 = vmatprep.subr.mxu0 0.0
        %593 = vmatpush1.msra.mxu0 0.0
        %594 = vmatprep.subr.mxu0 0.0
        %595 = vmatpush1.msra.mxu0 0.0
        %596 = vmatprep.subr.mxu0 0.0
        %597 = vmatpush1.msra.mxu0 0.0
        %598 = vmatprep.subr.mxu0 0.0
        %599 = vmatpush1.msra.mxu0 0.0
        %600 = vmatprep.mubr.f32.mxu0 0.0
        %601 = vmatmul.mubr.f32.gmra.mrb[0].mxu0 %v501
        %v602 = vpop.f32.mrb[0].mxu0
        %v603 = vadd.f32 0.0, %v602
        %v604 = vpop.f32.mrb[0].mxu0
        %605 = vmatprep.mubr.f32.mxu0 0.0
        %606 = vmatmul.mubr.f32.gmra.mrb[0].mxu0 %v504
        %v607 = vpop.f32.mrb[0].mxu0
        %v608 = vadd.f32 0.0, %v607
        %v609 = vpop.f32.mrb[0].mxu0
        %610 = vmatprep.mubr.f32.mxu0 0.0
        %611 = vmatmul.mubr.f32.gmra.mrb[0].mxu0 %v507
        %v612 = vpop.f32.mrb[0].mxu0
        %v613 = vadd.f32 0.0, %v612
        %v614 = vpop.f32.mrb[0].mxu0
        %615 = vmatprep.mubr.f32.mxu0 0.0
        %616 = vmatmul.mubr.f32.gmra.mrb[0].mxu0 %v510
        %v617 = vpop.f32.mrb[0].mxu0
        %v618 = vadd.f32 0.0, %v617
        %v619 = vpop.f32.mrb[0].mxu0
        %620 = vmatprep.mubr.f32.mxu0 0.0
        %621 = vmatmul.mubr.f32.gmra.mrb[0].mxu0 %v513
        %v622 = vpop.f32.mrb[0].mxu0
        %v623 = vadd.f32 0.0, %v622
        %v624 = vpop.f32.mrb[0].mxu0
        %625 = vmatprep.mubr.f32.mxu0 0.0
        %626 = vmatmul.mubr.f32.gmra.mrb[0].mxu0 %v516
        %v627 = vpop.f32.mrb[0].mxu0
        %v628 = vadd.f32 0.0, %v627
        %v629 = vpop.f32.mrb[0].mxu0
        %630 = vmatprep.mubr.f32.mxu0 0.0
        %631 = vmatmul.mubr.f32.gmra.mrb[0].mxu0 %v519
        %v632 = vpop.f32.mrb[0].mxu0
        %v633 = vadd.f32 0.0, %v632
        %v634 = vpop.f32.mrb[0].mxu0
        %635 = vmatprep.mubr.f32.mxu0 0.0
        %636 = vmatmul.mubr.f32.gmra.mrb[0].mxu0 %v522
        %v637 = vpop.f32.mrb[0].mxu0
        %v638 = vadd.f32 0.0, %v637
        %v639 = vpop.f32.mrb[0].mxu0
        %640 = vmatprep.mubr.f32.mxu0 0.0
        %641 = vmatmul.mubr.f32.gmra.mrb[0].mxu0 %v525
        %v642 = vpop.f32.mrb[0].mxu0
        %v643 = vadd.f32 0.0, %v642
        %v644 = vpop.f32.mrb[0].mxu0
        %645 = vmatprep.mubr.f32.mxu0 0.0
        %646 = vmatmul.mubr.f32.gmra.mrb[0].mxu0 %v528
        %v647 = vpop.f32.mrb[0].mxu0
        %v648 = vadd.f32 0.0, %v647
        %v649 = vpop.f32.mrb[0].mxu0
        %650 = vmatprep.mubr.f32.mxu0 0.0
        %651 = vmatmul.mubr.f32.gmra.mrb[0].mxu0 %v531
        %v652 = vpop.f32.mrb[0].mxu0
        %v653 = vadd.f32 0.0, %v652
        %v654 = vpop.f32.mrb[0].mxu0
        %655 = vmatprep.mubr.f32.mxu0 0.0
        %656 = vmatmul.mubr.f32.gmra.mrb[0].mxu0 %v534
        %v657 = vpop.f32.mrb[0].mxu0
        %v658 = vadd.f32 0.0, %v657
        %v659 = vpop.f32.mrb[0].mxu0
        %660 = vdwg.mxu0
        %v661 = vmul.f32 %v603, %v603
        %v662 = vmul.f32 %v608, %v608
        %v663 = vmul.f32 %v613, %v613
        %v664 = vmul.f32 %v618, %v618
        %v665 = vmul.f32 %v623, %v623
        %v666 = vmul.f32 %v628, %v628
        %v667 = vmul.f32 %v633, %v633
        %v668 = vmul.f32 %v638, %v638
        %v669 = vmul.f32 %v643, %v643
        %v670 = vmul.f32 %v648, %v648
        %v671 = vmul.f32 %v653, %v653
        %v672 = vmul.f32 %v658, %v658
        %v673 = vsel %vm394, %v661, 0.0
        %v674 = vsel %vm394, %v665, 0.0
        %v675 = vadd.f32 %v673, %v674
        %v676 = vsel %vm394, %v669, 0.0
        %v677 = vadd.f32 %v675, %v676
        %v678 = vsel %vm394, %v662, 0.0
        %v679 = vsel %vm394, %v666, 0.0
        %v680 = vadd.f32 %v678, %v679
        %v681 = vsel %vm394, %v670, 0.0
        %v682 = vadd.f32 %v680, %v681
        %v683 = vsel %vm394, %v663, 0.0
        %v684 = vsel %vm394, %v667, 0.0
        %v685 = vadd.f32 %v683, %v684
        %v686 = vsel %vm394, %v671, 0.0
        %v687 = vadd.f32 %v685, %v686
        %v688 = vsel %vm394, %v664, 0.0
        %v689 = vsel %vm394, %v668, 0.0
        %v690 = vadd.f32 %v688, %v689
        %v691 = vsel %vm394, %v672, 0.0
        %v692 = vadd.f32 %v690, %v691
        %v693 = vadd.f32 %v363, %v677
        %v694 = vadd.f32 %v364, %v682
        %v695 = vadd.f32 %v365, %v687
        %v696 = vadd.f32 %v366, %v692
        %697 = vst.msk [vmem:[%s360] sm:$0xff] %vm394, %v693
        %698 = vst.msk [vmem:[%s360 + $0x8] sm:$0xff] %vm394, %v694
        %699 = vst.msk [vmem:[%s360 + $0x10] sm:$0xff] %vm394, %v695
        %700 = vst.msk [vmem:[%s360 + $0x18] sm:$0xff] %vm394, %v696
        %v701 = vmul.f32 %v474, %v367
        %v702 = vmul.f32 %v479, %v368
        %v703 = vmul.f32 %v484, %v369
        %v704 = vmul.f32 %v489, %v370
        %v705 = vmul.f32 %v474, %v371
        %v706 = vmul.f32 %v479, %v372
        %v707 = vmul.f32 %v484, %v373
        %v708 = vmul.f32 %v489, %v374
        %v709 = vmul.f32 %v474, %v375
        %v710 = vmul.f32 %v479, %v376
        %v711 = vmul.f32 %v484, %v377
        %v712 = vmul.f32 %v489, %v378
        %713 = vst.msk [vmem:[%s348] sm:$0xff] %vm394, %v701
        %714 = vst.msk [vmem:[%s348 + $0x8] sm:$0xff] %vm394, %v702
        %715 = vst.msk [vmem:[%s348 + $0x10] sm:$0xff] %vm394, %v703
        %716 = vst.msk [vmem:[%s348 + $0x18] sm:$0xff] %vm394, %v704
        %717 = vst.msk [vmem:[%s348 + $0x20] sm:$0xff] %vm394, %v705
        %718 = vst.msk [vmem:[%s348 + $0x28] sm:$0xff] %vm394, %v706
        %719 = vst.msk [vmem:[%s348 + $0x30] sm:$0xff] %vm394, %v707
        %720 = vst.msk [vmem:[%s348 + $0x38] sm:$0xff] %vm394, %v708
        %721 = vst.msk [vmem:[%s348 + $0x40] sm:$0xff] %vm394, %v709
        %722 = vst.msk [vmem:[%s348 + $0x48] sm:$0xff] %vm394, %v710
        %723 = vst.msk [vmem:[%s348 + $0x50] sm:$0xff] %vm394, %v711
        %724 = vst.msk [vmem:[%s348 + $0x58] sm:$0xff] %vm394, %v712
        %s725 = smul.u32 4, %s18
        %p726 = scmp.lt.s32.totalorder %s725, 15
        %s727 = scalar_select %p726, %s725, 15
        %s728 = smul.addr %s727, 8
        %s729 = scalar_lea.vmem %s5, %s728
        %s730 = sand.u32 %s167, 1
        %s731 = sand.u32 %s167, 1
        %s732 = smul.addr %s731, 96
        %s733 = scalar_lea.vmem [#allocation3], %s732
        // Predicated region
        $region79: #{tpu_custom_call.1} parent=73 // pred_check
          %p734 = pneg %p151
        $region80: #{tpu_custom_call.1} parent=73 // pred_check_branch
          %736 = sbr.rel (%p734) target = $region82
        $region81: #{tpu_custom_call.1} parent=73 // pred_region
          %s737 = smul.u32 4, %s18
        $region82: #{tpu_custom_call.1} parent=73 // pred_fallthru
          _
        // Predicated region
        $region83: #{tpu_custom_call.1} parent=73 // pred_check
          %p738 = pneg %p177
        $region84: #{tpu_custom_call.1} parent=73 // pred_check_branch
          %740 = sbr.rel (%p738) target = $region86
        $region85: #{tpu_custom_call.1} parent=73 // pred_region
          %s741 = smul.u32 4, %s18
          %s742 = smul.addr %s741, 8
          %s743 = scalar_lea.vmem %s6, %s742
          // Predicated region
          $region87: #{tpu_custom_call.1} parent=85 // pred_check
            _
          $region88: #{tpu_custom_call.1} parent=85 // pred_check_branch
            %745 = sbr.rel (0) target = $region90
          $region89: #{tpu_custom_call.1} parent=85 // pred_region
            // Predicated region
            $region91: #{tpu_custom_call.1} parent=89 // pred_check
              _
            $region92: #{tpu_custom_call.1} parent=89 // pred_check_branch
              %747 = sbr.rel (0) target = $region94
            $region93: #{tpu_custom_call.1} parent=89 // pred_region
              // Predicated region
              $region106: #{tpu_custom_call.1} parent=93 // pred_check
                _
              $region107: #{tpu_custom_call.1} parent=93 // pred_check_branch
                %784 = sbr.rel (0) target = $region109
              $region108: #{tpu_custom_call.1} parent=93 // pred_region
                loop: start=0, step=1, limit=1
                $region110: #{tpu_custom_call.1} parent=108 // loop_pre_header
                  _
                $region111: #{tpu_custom_call.1} parent=108 // loop_header
                  %s786 = sphi 0, %s790
                  %p787 = scmp.ge.s32.totalorder %s786, 1
                  %s791 = sphi %s733, %s733
                  %s792 = sphi %s743, %s743
                $region112: #{tpu_custom_call.1} parent=108 // loop_header_branch
                  %789 = sbr.rel (%p787) target = $region116
                $region113: #{tpu_custom_call.1} parent=108 // loop_body
                  %v793 = vld [vmem:[%s791] sm:$0xff]
                  %794 = vst [vmem:[%s792] sm:$0xff] %v793
                  %v795 = vld [vmem:[%s791 + $0x8] sm:$0xff]
                  %796 = vst [vmem:[%s792 + $0x8] sm:$0xff] %v795
                  %v797 = vld [vmem:[%s791 + $0x10] sm:$0xff]
                  %798 = vst [vmem:[%s792 + $0x10] sm:$0xff] %v797
                  %v799 = vld [vmem:[%s791 + $0x18] sm:$0xff]
                  %800 = vst [vmem:[%s792 + $0x18] sm:$0xff] %v799
                  %v801 = vld [vmem:[%s791 + $0x20] sm:$0xff]
                  %802 = vst [vmem:[%s792 + $0x80] sm:$0xff] %v801
                  %v803 = vld [vmem:[%s791 + $0x28] sm:$0xff]
                  %804 = vst [vmem:[%s792 + $0x88] sm:$0xff] %v803
                  %v805 = vld [vmem:[%s791 + $0x30] sm:$0xff]
                  %806 = vst [vmem:[%s792 + $0x90] sm:$0xff] %v805
                  %v807 = vld [vmem:[%s791 + $0x38] sm:$0xff]
                  %808 = vst [vmem:[%s792 + $0x98] sm:$0xff] %v807
                  %v809 = vld [vmem:[%s791 + $0x40] sm:$0xff]
                  %810 = vst [vmem:[%s792 + $0x100] sm:$0xff] %v809
                  %v811 = vld [vmem:[%s791 + $0x48] sm:$0xff]
                  %812 = vst [vmem:[%s792 + $0x108] sm:$0xff] %v811
                  %v813 = vld [vmem:[%s791 + $0x50] sm:$0xff]
                  %814 = vst [vmem:[%s792 + $0x110] sm:$0xff] %v813
                  %v815 = vld [vmem:[%s791 + $0x58] sm:$0xff]
                  %816 = vst [vmem:[%s792 + $0x118] sm:$0xff] %v815
                $region114: #{tpu_custom_call.1} parent=108 // loop_footer
                  %s790 = sadd.s32 1, %s786
                $region115: #{tpu_custom_call.1} parent=108 // loop_footer_branch
                  %785 = sbr.rel target = $region111
                $region116: #{tpu_custom_call.1} parent=108 // loop_exit
                  _
              $region109: #{tpu_custom_call.1} parent=93 // pred_fallthru
                _
              // Predicated region
              $region117: #{tpu_custom_call.1} parent=93 // pred_check
                _
              $region118: #{tpu_custom_call.1} parent=93 // pred_check_branch
                %818 = sbr.rel target = $region120
              $region119: #{tpu_custom_call.1} parent=93 // pred_region
                _
              $region120: #{tpu_custom_call.1} parent=93 // pred_fallthru
                _
            $region94: #{tpu_custom_call.1} parent=89 // pred_fallthru
              _
            // Predicated region
            $region95: #{tpu_custom_call.1} parent=89 // pred_check
              _
            $region96: #{tpu_custom_call.1} parent=89 // pred_check_branch
              %749 = sbr.rel target = $region98
            $region97: #{tpu_custom_call.1} parent=89 // pred_region
              loop: start=0, step=1, limit=1
              $region99: #{tpu_custom_call.1} parent=97 // loop_pre_header
                _
              $region100: #{tpu_custom_call.1} parent=97 // loop_header
                %s752 = sphi 0, %s756
                %p753 = scmp.ge.s32.totalorder %s752, 1
                %s757 = sphi %s733, %s733
                %s758 = sphi %s743, %s743
              $region101: #{tpu_custom_call.1} parent=97 // loop_header_branch
                %755 = sbr.rel (%p753) target = $region105
              $region102: #{tpu_custom_call.1} parent=97 // loop_body
                %v759 = vld [vmem:[%s757] sm:$0xff]
                %760 = vst [vmem:[%s758] sm:$0xff] %v759
                %v761 = vld [vmem:[%s757 + $0x8] sm:$0xff]
                %762 = vst [vmem:[%s758 + $0x8] sm:$0xff] %v761
                %v763 = vld [vmem:[%s757 + $0x10] sm:$0xff]
                %764 = vst [vmem:[%s758 + $0x10] sm:$0xff] %v763
                %v765 = vld [vmem:[%s757 + $0x18] sm:$0xff]
                %766 = vst [vmem:[%s758 + $0x18] sm:$0xff] %v765
                %v767 = vld [vmem:[%s757 + $0x20] sm:$0xff]
                %768 = vst [vmem:[%s758 + $0x80] sm:$0xff] %v767
                %v769 = vld [vmem:[%s757 + $0x28] sm:$0xff]
                %770 = vst [vmem:[%s758 + $0x88] sm:$0xff] %v769
                %v771 = vld [vmem:[%s757 + $0x30] sm:$0xff]
                %772 = vst [vmem:[%s758 + $0x90] sm:$0xff] %v771
                %v773 = vld [vmem:[%s757 + $0x38] sm:$0xff]
                %774 = vst [vmem:[%s758 + $0x98] sm:$0xff] %v773
                %v775 = vld [vmem:[%s757 + $0x40] sm:$0xff]
                %776 = vst [vmem:[%s758 + $0x100] sm:$0xff] %v775
                %v777 = vld [vmem:[%s757 + $0x48] sm:$0xff]
                %778 = vst [vmem:[%s758 + $0x108] sm:$0xff] %v777
                %v779 = vld [vmem:[%s757 + $0x50] sm:$0xff]
                %780 = vst [vmem:[%s758 + $0x110] sm:$0xff] %v779
                %v781 = vld [vmem:[%s757 + $0x58] sm:$0xff]
                %782 = vst [vmem:[%s758 + $0x118] sm:$0xff] %v781
              $region103: #{tpu_custom_call.1} parent=97 // loop_footer
                %s756 = sadd.s32 1, %s752
              $region104: #{tpu_custom_call.1} parent=97 // loop_footer_branch
                %751 = sbr.rel target = $region100
              $region105: #{tpu_custom_call.1} parent=97 // loop_exit
                _
            $region98: #{tpu_custom_call.1} parent=89 // pred_fallthru
              _
          $region90: #{tpu_custom_call.1} parent=85 // pred_fallthru
            _
          %819 = vnop
        $region86: #{tpu_custom_call.1} parent=73 // pred_fallthru
          _
      $region74: #{tpu_custom_call.1} parent=5 // pred_fallthru
        _
      %p820 = scmp.le.s32.totalorder 2, %s13
      // Predicated region
      $region121: #{tpu_custom_call.1} parent=5 // pred_check
        %p821 = pneg %p820
      $region122: #{tpu_custom_call.1} parent=5 // pred_check_branch
        %823 = sbr.rel (%p821) target = $region124
      $region123: #{tpu_custom_call.1} parent=5 // pred_region
        %s824 = ssub.s32 %s13, 2
        // Predicated region
        $region125: #{tpu_custom_call.1} parent=123 // pred_check
          %p825 = pneg %p157
        $region126: #{tpu_custom_call.1} parent=123 // pred_check_branch
          %827 = sbr.rel (%p825) target = $region128
        $region127: #{tpu_custom_call.1} parent=123 // pred_region
          %s828 = smul.u32 4, %s19
          %p829 = scmp.lt.s32.totalorder %s828, 15
          %s830 = scalar_select %p829, %s828, 15
          %s831 = smul.addr %s830, 8
          %s832 = scalar_lea.vmem %s5, %s831
        $region128: #{tpu_custom_call.1} parent=123 // pred_fallthru
          _
        // Predicated region
        $region129: #{tpu_custom_call.1} parent=123 // pred_check
          %p833 = pneg %p183
        $region130: #{tpu_custom_call.1} parent=123 // pred_check_branch
          %835 = sbr.rel (%p833) target = $region132
        $region131: #{tpu_custom_call.1} parent=123 // pred_region
          %s836 = sand.u32 %s168, 1
          %s837 = sand.u32 %s168, 1
          %s838 = smul.addr %s837, 96
          %s839 = scalar_lea.vmem [#allocation3], %s838
        $region132: #{tpu_custom_call.1} parent=123 // pred_fallthru
          _
      $region124: #{tpu_custom_call.1} parent=5 // pred_fallthru
        _
    $region6: #{tpu_custom_call.1} parent=1 // loop_footer
      %s17 = sadd.s32 1, %s13
    $region7: #{tpu_custom_call.1} parent=1 // loop_footer_branch
      %12 = sbr.rel target = $region3
    $region8: #{tpu_custom_call.1} parent=1 // loop_exit
      _

</llo_original>
